<compile_context>
chip_gen: v7x
topology: tpu7x:2x2x1
jax: 0.10.0
libtpu: 0.0.40
codegen_flags: <defaults>
</compile_context>

<pallas_src>
import functools

import jax
import jax.numpy as jnp
from jax.experimental import pallas as pl
from jax.experimental.pallas import tpu as pltpu


def _masked_bce_kernel(x_ref, t_ref, m_ref, out_ref, acc_ref, *,
                       n_rows, n_cols, tile_n, tile_m, acc_w,
                       mask_rows, mask_cols, n_row_blocks, n_col_blocks):
    """One grid step: a (tile_n, tile_m) slab of logits/targets.

    x_ref, t_ref: (tile_n, tile_m) tiles in their native dtypes
    m_ref:        (tile_n, 1) float32 per-row keep mask (0/1)
    out_ref:      (1, 1, acc_w) float32 reduced partial sum for this row block
    acc_ref:      (tile_n, acc_w) float32 VMEM scratch accumulator, resident
                  across the column (reduction) grid axis
    """
    i = pl.program_id(0)
    j = pl.program_id(1)

    @pl.when(j == 0)
    def _init():
        acc_ref[...] = jnp.zeros_like(acc_ref)

    x = x_ref[...].astype(jnp.float32)
    t = t_ref[...].astype(jnp.float32)
    m = m_ref[...].astype(jnp.float32)          # (tile_n, 1) broadcasts over cols

    row_ok = None
    if mask_rows:
        row_ids = jax.lax.broadcasted_iota(jnp.int32, (tile_n, 1), 0)
        row_ok = (i * tile_n + row_ids) < n_rows
        m = jnp.where(row_ok, m, 0.0)           # sanitize garbage mask rows; (tile_n,1) only

    # Numerically stable BCE-with-logits (matches torch):
    #   max(x, 0) - x * t + log1p(exp(-|x|))
    loss = jnp.maximum(x, 0.0) - x * t + jnp.log1p(jnp.exp(-jnp.abs(x)))
    masked = loss * m

    def accumulate(vals):
        # Static, 128-aligned lane-block slices -> no relayout; pure VPU adds
        # into the resident accumulator, no per-step cross-lane (XLU) reduce.
        acc = acc_ref[...]
        for lb in range(tile_m // acc_w):
            acc = acc + vals[:, lb * acc_w:(lb + 1) * acc_w]
        acc_ref[...] = acc

    if mask_rows or mask_cols:
        # Only the last row/col block can contain out-of-range elements; gate
        # the per-element compare/select so interior tiles skip it entirely.
        is_edge = None
        if mask_rows:
            is_edge = i == n_row_blocks - 1
        if mask_cols:
            col_edge = j == n_col_blocks - 1
            is_edge = col_edge if is_edge is None else jnp.logical_or(is_edge, col_edge)

        @pl.when(jnp.logical_not(is_edge))
        def _interior():
            accumulate(masked)

        @pl.when(is_edge)
        def _edge():
            valid = None
            if mask_rows:
                valid = row_ok
            if mask_cols:
                col_ids = jax.lax.broadcasted_iota(jnp.int32, (1, tile_m), 1)
                col_ok = (j * tile_m + col_ids) < n_cols
                valid = col_ok if valid is None else jnp.logical_and(valid, col_ok)
            # jnp.where so OOB garbage (even NaN) cannot leak into the sum.
            accumulate(jnp.where(valid, masked, 0.0))
    else:
        accumulate(masked)

    @pl.when(j == n_col_blocks - 1)
    def _finalize():
        # Reduce the resident (tile_n, acc_w) accumulator to one lane vector
        # per row block; only (1, acc_w) f32 per block is written to HBM.
        out_ref[...] = jnp.sum(acc_ref[...], axis=0, keepdims=True).reshape(1, 1, acc_w)


def _round_up(x, m):
    return ((x + m - 1) // m) * m


def _choose_tiles(n_rows, n_cols, bytes_per_elem, row_align):
    """Pick (tile_n, tile_m).

    bytes_per_elem: combined x+t bytes per element (both inputs are streamed).
    Targets ~12 MiB of combined input data per grid step so double-buffered
    inputs (2x) stay well under every generation's VMEM (incl. v7x's 64 MiB),
    while amortizing the ~0.35 us per-grid-step overhead.  tile_n is capped
    near ceil(n_rows/2) so the "parallel" row axis gives >= 2 blocks (keeps
    both v7x TensorCores busy) whenever n_rows allows.
    """
    LANE = 128
    COL_CAP = 4096
    if n_cols <= COL_CAP:
        tile_m = n_cols                          # full-dim block (always legal)
    else:
        tile_m = COL_CAP                         # multiple of 128; last block partial

    if n_rows <= row_align:
        return int(n_rows), int(tile_m)

    target_bytes = 12 * 1024 * 1024              # x+t bytes per pipeline slot
    tile_n = max(row_align,
                 (target_bytes // (tile_m * bytes_per_elem)) // row_align * row_align)
    # Megacore: keep at least two row blocks so both v7x TCs get work.
    half = _round_up((n_rows + 1) // 2, row_align)
    tile_n = min(tile_n, max(half, row_align))
    tile_n = min(tile_n, _round_up(n_rows, row_align))
    return int(tile_n), int(tile_m)


@functools.partial(jax.jit, static_argnames=("tile_n", "tile_m"))
def channel_masked_bce_with_logits_loss_2d(inp, target, mask, *,
                                           tile_n=None, tile_m=None):
    """inp/target: (B, C, H, W) float (any float dtype); mask: (B, C) bool/0-1."""
    B, C, H, W = inp.shape
    N, M = B * C, H * W

    # Free, metadata-only reshapes; inputs keep their native dtype in HBM.
    x = inp.reshape(N, M)
    t = target.reshape(N, M)
    m = mask.reshape(N, 1).astype(jnp.float32)   # tiny

    x_item = jnp.dtype(inp.dtype).itemsize
    t_item = jnp.dtype(target.dtype).itemsize
    # Sublane alignment follows the packed granularity of the narrower dtype;
    # VMEM budget uses the sum of both itemsizes (handles mixed precision).
    row_align = 8 * max(1, 4 // min(x_item, t_item))
    auto_tn, auto_tm = _choose_tiles(N, M, x_item + t_item, row_align)

    tn = auto_tn if tile_n is None else int(tile_n)
    tm = auto_tm if tile_m is None else int(tile_m)
    if tn >= N:
        tn = N                                   # full-dim block (always legal)
    if tm >= M:
        tm = M

    if not (tm == M or (tm >= 128 and tm % 128 == 0)):
        raise ValueError("tile_m must equal H*W or be a multiple of 128")
    acc_w = 128 if (tm >= 128 and tm % 128 == 0) else tm
    if not (tn == N or tn % 8 == 0):
        raise ValueError("tile_n must equal B*C or be a multiple of 8")

    grid = (pl.cdiv(N, tn), pl.cdiv(M, tm))

    kernel = functools.partial(
        _masked_bce_kernel,
        n_rows=N, n_cols=M, tile_n=tn, tile_m=tm, acc_w=acc_w,
        mask_rows=(N % tn) != 0, mask_cols=(M % tm) != 0,
        n_row_blocks=grid[0], n_col_blocks=grid[1],
    )

    # 2 pipeline buffers for each streamed input + mask, plus the accumulator
    # and the tiny output block; cap at 48 MiB (safe on v5e/v6e/v7x).
    vmem_needed = (2 * tn * tm * (x_item + t_item) + 2 * tn * 4
                   + tn * acc_w * 4 + 2 * acc_w * 4)
    vmem_limit = int(min(48 << 20, max(32 << 20, vmem_needed + (8 << 20))))

    partials = pl.pallas_call(
        kernel,
        out_shape=jax.ShapeDtypeStruct((grid[0], 1, acc_w), jnp.float32),
        grid_spec=pltpu.PrefetchScalarGridSpec(
            num_scalar_prefetch=0,
            grid=grid,
            in_specs=[
                pl.BlockSpec((tn, tm), lambda i, j: (i, j)),
                pl.BlockSpec((tn, tm), lambda i, j: (i, j)),
                pl.BlockSpec((tn, 1), lambda i, j: (i, 0)),
            ],
            out_specs=pl.BlockSpec((1, 1, acc_w), lambda i, j: (i, 0, 0)),
            scratch_shapes=[pltpu.VMEM((tn, acc_w), jnp.float32)],
        ),
        compiler_params=pltpu.CompilerParams(
            dimension_semantics=("parallel", "arbitrary"),
            vmem_limit_bytes=vmem_limit,
        ),
    )(x, t, m)

    loss_sum = jnp.sum(partials)                 # tiny: grid[0] * acc_w floats
    mask_sum = jnp.sum(mask.astype(jnp.float32))
    denom = jnp.where(mask_sum > 0, mask_sum, 1.0)   # safe: avoids 0/0
    return loss_sum / denom


def _reference(inp, target, mask):
    x = inp.astype(jnp.float32)
    t = target.astype(jnp.float32)
    loss = jnp.maximum(x, 0.0) - x * t + jnp.log1p(jnp.exp(-jnp.abs(x)))
    loss = loss * mask.astype(jnp.float32)[..., None, None]
    s = loss.sum()
    ms = mask.astype(jnp.float32).sum()
    return jnp.where(ms > 0, s / ms, s)


if __name__ == "__main__":
    key = jax.random.PRNGKey(0)
    k1, k2, k3 = jax.random.split(key, 3)

    # Primary case: (B, C, H, W) = (2, 4, 16, 16), float32.
    B, C, H, W = 2, 4, 16, 16
    inp = jax.random.normal(k1, (B, C, H, W), dtype=jnp.float32)
    target = (jax.random.uniform(k2, (B, C, H, W)) > 0.5).astype(jnp.float32)
    mask = jax.random.uniform(k3, (B, C)) > 0.3

    out = jax.block_until_ready(channel_masked_bce_with_logits_loss_2d(inp, target, mask))
    ref = _reference(inp, target, mask)
    assert jnp.allclose(out, ref, rtol=1e-5, atol=1e-4), (out, ref)

    # All-False mask branch (returns the raw, zero sum).
    zero_mask = jnp.zeros((B, C), dtype=bool)
    out0 = jax.block_until_ready(
        channel_masked_bce_with_logits_loss_2d(inp, target, zero_mask))
    assert jnp.allclose(out0, _reference(inp, target, zero_mask), atol=1e-5)

    # bf16 inputs: streamed at 16 bits from HBM, cast per-tile in VMEM.
    kb1, kb2, kb3 = jax.random.split(jax.random.PRNGKey(1), 3)
    Bb, Cb = 2, 8
    inp_bf = jax.random.normal(kb1, (Bb, Cb, H, W), dtype=jnp.bfloat16)
    tgt_bf = (jax.random.uniform(kb2, (Bb, Cb, H, W)) > 0.5).astype(jnp.bfloat16)
    mask_b = jax.random.uniform(kb3, (Bb, Cb)) > 0.5
    out_bf = jax.block_until_ready(
        channel_masked_bce_with_logits_loss_2d(inp_bf, tgt_bf, mask_b))
    assert jnp.allclose(out_bf, _reference(inp_bf, tgt_bf, mask_b),
                        rtol=1e-3, atol=1e-3), (out_bf,)

    # Ragged shapes with forced small tiles: grid = (2, 3) with partial edge
    # row AND column tiles -> exercises the gated edge-masking paths.
    kr1, kr2, kr3 = jax.random.split(jax.random.PRNGKey(2), 3)
    Br, Cr, Hr, Wr = 2, 5, 15, 20     # N = 10 rows, M = 300 cols
    inp_r = jax.random.normal(kr1, (Br, Cr, Hr, Wr), dtype=jnp.float32)
    tgt_r = (jax.random.uniform(kr2, (Br, Cr, Hr, Wr)) > 0.5).astype(jnp.float32)
    mask_r = jax.random.uniform(kr3, (Br, Cr)) > 0.4
    out_r = jax.block_until_ready(
        channel_masked_bce_with_logits_loss_2d(inp_r, tgt_r, mask_r,
                                               tile_n=8, tile_m=128))
    assert jnp.allclose(out_r, _reference(inp_r, tgt_r, mask_r),
                        rtol=1e-5, atol=1e-4), (out_r,)

    # Mixed precision (bf16 logits, f32 targets): exercises max-itemsize VMEM
    # budgeting, the >=2 row-block (megacore) split, and the row-only edge path.
    km1, km2, km3 = jax.random.split(jax.random.PRNGKey(3), 3)
    Bm, Cm = 2, 12                    # N = 24 rows -> tile_n = 16, grid[0] = 2
    inp_m = jax.random.normal(km1, (Bm, Cm, H, W), dtype=jnp.bfloat16)
    tgt_m = (jax.random.uniform(km2, (Bm, Cm, H, W)) > 0.5).astype(jnp.float32)
    mask_m = jax.random.uniform(km3, (Bm, Cm)) > 0.4
    out_m = jax.block_until_ready(
        channel_masked_bce_with_logits_loss_2d(inp_m, tgt_m, mask_m))
    assert jnp.allclose(out_m, _reference(inp_m, tgt_m, mask_m),
                        rtol=1e-3, atol=1e-3), (out_m,)

    print("KERNEL_OK")
</pallas_src>

<mosaic_0001>
module attributes {stable_mosaic.version = 11 : i64} {
  func.func @_masked_bce_kernel(%arg0: i32, %arg1: i32, %arg2: memref<8x256xf32, #tpu.memory_space<vmem>>, %arg3: memref<8x256xf32, #tpu.memory_space<vmem>>, %arg4: memref<8x1xf32, #tpu.memory_space<vmem>>, %arg5: memref<1x1x128xf32, #tpu.memory_space<vmem>>, %arg6: memref<8x128xf32, #tpu.memory_space<vmem>>) attributes {dimension_semantics = [#tpu.dimension_semantics<parallel>, #tpu.dimension_semantics<arbitrary>], iteration_bounds = array<i64: 1, 1>, scalar_prefetch = 0 : i64, scratch_operands = 1 : i64, tpu.core_type = #tpu.core_type<tc>, window_params = [{transform_indices = @transform_0, window_bounds = array<i64: 8, 256>}, {transform_indices = @transform_1, window_bounds = array<i64: 8, 256>}, {transform_indices = @transform_2, window_bounds = array<i64: 8, 1>}, {transform_indices = @transform_3, window_bounds = array<i64: 1, 1, 128>}]} {
    %c0_i32 = arith.constant 0 : i32
    %0 = arith.cmpi eq, %arg1, %c0_i32 : i32
    %1 = arith.extui %0 : i1 to i32
    %c0_i32_0 = arith.constant 0 : i32
    %2 = arith.cmpi ne, %1, %c0_i32_0 : i32
    scf.if %2 {
      %cst_13 = arith.constant 0.000000e+00 : f32
      %27 = vector.broadcast %cst_13 : f32 to vector<8x128xf32>
      %c0_14 = arith.constant 0 : index
      %c0_15 = arith.constant 0 : index
      %28 = vector.load %arg6[%c0_14, %c0_15] : memref<8x128xf32, #tpu.memory_space<vmem>>, vector<8x128xf32>
      tpu.vector_store %arg6[%c0_14, %c0_15], %27 {strides = array<i32>} : memref<8x128xf32, #tpu.memory_space<vmem>>, vector<8x128xf32>,
    } else {
    }
    %c0 = arith.constant 0 : index
    %c0_1 = arith.constant 0 : index
    %3 = vector.load %arg2[%c0, %c0_1] : memref<8x256xf32, #tpu.memory_space<vmem>>, vector<8x256xf32>
    %c0_2 = arith.constant 0 : index
    %c0_3 = arith.constant 0 : index
    %4 = vector.load %arg3[%c0_2, %c0_3] : memref<8x256xf32, #tpu.memory_space<vmem>>, vector<8x256xf32>
    %c0_4 = arith.constant 0 : index
    %c0_5 = arith.constant 0 : index
    %5 = vector.load %arg4[%c0_4, %c0_5] : memref<8x1xf32, #tpu.memory_space<vmem>>, vector<8x1xf32>
    %cst = arith.constant 0.000000e+00 : f32
    %6 = vector.broadcast %cst : f32 to vector<8x256xf32>
    %7 = arith.maximumf %3, %6 : vector<8x256xf32>
    %8 = arith.mulf %3, %4 : vector<8x256xf32>
    %9 = arith.subf %7, %8 : vector<8x256xf32>
    %10 = math.absf %3 : vector<8x256xf32>
    %cst_6 = arith.constant 0.000000e+00 : f32
    %11 = vector.broadcast %cst_6 : f32 to vector<8x256xf32>
    %12 = arith.subf %11, %10 : vector<8x256xf32>
    %13 = math.exp %12 : vector<8x256xf32>
    %14 = math.log1p %13 : vector<8x256xf32>
    %15 = arith.addf %9, %14 : vector<8x256xf32>
    %16 = vector.broadcast %5 : vector<8x1xf32> to vector<8x256xf32>
    %17 = arith.mulf %15, %16 : vector<8x256xf32>
    %c0_7 = arith.constant 0 : index
    %c0_8 = arith.constant 0 : index
    %18 = vector.load %arg6[%c0_7, %c0_8] : memref<8x128xf32, #tpu.memory_space<vmem>>, vector<8x128xf32>
    %19 = vector.extract_strided_slice %17 {offsets = [0, 0], sizes = [8, 128], strides = [1, 1]} : vector<8x256xf32> to vector<8x128xf32>
    %20 = arith.addf %18, %19 : vector<8x128xf32>
    %21 = vector.extract_strided_slice %17 {offsets = [0, 128], sizes = [8, 128], strides = [1, 1]} : vector<8x256xf32> to vector<8x128xf32>
    %22 = arith.addf %20, %21 : vector<8x128xf32>
    %c0_9 = arith.constant 0 : index
    %c0_10 = arith.constant 0 : index
    %23 = vector.load %arg6[%c0_9, %c0_10] : memref<8x128xf32, #tpu.memory_space<vmem>>, vector<8x128xf32>
    tpu.vector_store %arg6[%c0_9, %c0_10], %22 {strides = array<i32>} : memref<8x128xf32, #tpu.memory_space<vmem>>, vector<8x128xf32>,
    %c0_i32_11 = arith.constant 0 : i32
    %24 = arith.cmpi eq, %arg1, %c0_i32_11 : i32
    %25 = arith.extui %24 : i1 to i32
    %c0_i32_12 = arith.constant 0 : i32
    %26 = arith.cmpi ne, %25, %c0_i32_12 : i32
    scf.if %26 {
      %c0_13 = arith.constant 0 : index
      %c0_14 = arith.constant 0 : index
      %27 = vector.load %arg6[%c0_13, %c0_14] : memref<8x128xf32, #tpu.memory_space<vmem>>, vector<8x128xf32>
      %cst_15 = arith.constant dense<0.000000e+00> : vector<128xf32>
      %28 = vector.multi_reduction <add>, %27, %cst_15 [0] : vector<8x128xf32> to vector<128xf32>
      %29 = vector.shape_cast %28 : vector<128xf32> to vector<1x128xf32>
      %30 = vector.shape_cast %29 : vector<1x128xf32> to vector<1x1x128xf32>
      %c0_16 = arith.constant 0 : index
      %c0_17 = arith.constant 0 : index
      %c0_18 = arith.constant 0 : index
      %31 = vector.load %arg5[%c0_16, %c0_17, %c0_18] : memref<1x1x128xf32, #tpu.memory_space<vmem>>, vector<1x1x128xf32>
      tpu.vector_store %arg5[%c0_16, %c0_17, %c0_18], %30 {strides = array<i32>} : memref<1x1x128xf32, #tpu.memory_space<vmem>>, vector<1x1x128xf32>,
    } else {
    }
    return
  }
  func.func @transform_0(%arg0: i32, %arg1: i32) -> (i32, i32) {
    %c0_i32 = arith.constant 0 : i32
    return %arg0, %arg1 : i32, i32
  }
  func.func @transform_1(%arg0: i32, %arg1: i32) -> (i32, i32) {
    %c0_i32 = arith.constant 0 : i32
    return %arg0, %arg1 : i32, i32
  }
  func.func @transform_2(%arg0: i32, %arg1: i32) -> (i32, i32) {
    %c0_i32 = arith.constant 0 : i32
    %c0_i32_0 = arith.constant 0 : i32
    return %arg0, %c0_i32 : i32, i32
  }
  func.func @transform_3(%arg0: i32, %arg1: i32) -> (i32, i32, i32) {
    %c0_i32 = arith.constant 0 : i32
    %c0_i32_0 = arith.constant 0 : i32
    %c0_i32_1 = arith.constant 0 : i32
    return %arg0, %c0_i32, %c0_i32_0 : i32, i32, i32
  }
}

</mosaic_0001>

<llo_original>
// kernel: channel_masked_bce_with_logits_loss_2d.1
$region0: #{channel_masked_bce_with_logits_loss_2d.1}
  #allocation0 [shape = 'u32[]', space=smem, size = 0x4, offset = 0x4, fixed_abs, tag = 'smem constant byte address 0x4 - core index']
  #allocation1 [shape = 'u32[144,128]{1,0:T(1,128)}', space=vmem, size = 0x12000, scoped, tag = 'internal scratch']
  #allocation2 [shape = 'f32[8,128]{1,0:T(8,128)}', space=vmem, size = 0x1000, scoped, tag = 'scratch operand']
  %s0 = inlined_call_operand.vmem [shape: f32[8,256], index: 0, kind: input, shape index: {}]
  %s1 = inlined_call_operand.vmem [shape: f32[8,256], index: 1, kind: input, shape index: {}]
  %s2 = inlined_call_operand.vmem [shape: f32[8,1], index: 2, kind: input, shape index: {}]
  %s3 = inlined_call_operand.vmem [shape: f32[1,1,128], index: 3, kind: output, shape index: {}]
  %s4 = sld [smem:[#allocation0]]
  $region30: #{channel_masked_bce_with_logits_loss_2d.1} parent=0
    _
  %s6 = ssub.s32 1, %s4
  %s7 = scalar_select 0, %s6, %s4
  // Predicated region
  $region2: #{channel_masked_bce_with_logits_loss_2d.1} parent=0 // pred_check
    _
  $region3: #{channel_masked_bce_with_logits_loss_2d.1} parent=0 // pred_check_branch
    %9 = sbr.rel (0) target = $region5
  $region4: #{channel_masked_bce_with_logits_loss_2d.1} parent=0 // pred_region
    _
  $region5: #{channel_masked_bce_with_logits_loss_2d.1} parent=0 // pred_fallthru
    _
  // Predicated region
  $region6: #{channel_masked_bce_with_logits_loss_2d.1} parent=0 // pred_check
    _
  $region7: #{channel_masked_bce_with_logits_loss_2d.1} parent=0 // pred_check_branch
    %11 = sbr.rel (0) target = $region9
  $region8: #{channel_masked_bce_with_logits_loss_2d.1} parent=0 // pred_region
    _
  $region9: #{channel_masked_bce_with_logits_loss_2d.1} parent=0 // pred_fallthru
    _
  // Predicated region
  $region10: #{channel_masked_bce_with_logits_loss_2d.1} parent=0 // pred_check
    _
  $region11: #{channel_masked_bce_with_logits_loss_2d.1} parent=0 // pred_check_branch
    %13 = sbr.rel (0) target = $region13
  $region12: #{channel_masked_bce_with_logits_loss_2d.1} parent=0 // pred_region
    _
  $region13: #{channel_masked_bce_with_logits_loss_2d.1} parent=0 // pred_fallthru
    _
  %p14 = scmp.eq.s32.totalorder 0, 0
  // Predicated region
  $region14: #{channel_masked_bce_with_logits_loss_2d.1} parent=0 // pred_check
    %p15 = pneg %p14
  $region15: #{channel_masked_bce_with_logits_loss_2d.1} parent=0 // pred_check_branch
    %17 = sbr.rel (%p15) target = $region17
  $region16: #{channel_masked_bce_with_logits_loss_2d.1} parent=0 // pred_region
    %18 = vst [vmem:[#allocation2] sm:$0xff] 0.0
  $region17: #{channel_masked_bce_with_logits_loss_2d.1} parent=0 // pred_fallthru
    _
  %v19 = vld [vmem:[%s0] sm:$0xff]
  %v20 = vld [vmem:[%s0 + $0x8] sm:$0xff]
  %v21 = vld [vmem:[%s1] sm:$0xff]
  %v22 = vld [vmem:[%s1 + $0x8] sm:$0xff]
  %v23 = vld [vmem:[%s2] sm:$0xff]
  %v24 = vmax.f32 %v19, 0.0
  %v25 = vmax.f32 %v20, 0.0
  %v26 = vmul.f32 %v19, %v21
  %v27 = vmul.f32 %v20, %v22
  %v28 = vsub.f32 %v24, %v26
  %v29 = vsub.f32 %v25, %v27
  %v30 = vand.u32 2147483647, %v19
  %v31 = vand.u32 2147483647, %v20
  %v32 = vsub.f32 0.0, %v30
  %v33 = vsub.f32 0.0, %v31
  %v34 = vmul.f32 %v32, 1.442695
  %v35 = vpow.pop %v34
  %v36 = vmul.f32 %v33, 1.442695
  %v37 = vpow.pop %v36
  %v38 = vadd.f32 %v35, 1.0
  %v39 = vlog2.pop %v38
  %v40 = vmul.f32 %v39, 0.6931472
  %v41 = vmul.f32 -0.5, %v35
  %v42 = vadd.f32 %v41, 1.0
  %v43 = vmul.f32 %v42, %v35
  %v44 = vand.u32 2147483647, %v35
  %vm45 = vcmp.lt.f32.partialorder %v44, 0.0004427343
  %v46 = vsel %vm45, %v43, %v40
  %v47 = vadd.f32 %v37, 1.0
  %v48 = vlog2.pop %v47
  %v49 = vmul.f32 %v48, 0.6931472
  %v50 = vmul.f32 -0.5, %v37
  %v51 = vadd.f32 %v50, 1.0
  %v52 = vmul.f32 %v51, %v37
  %v53 = vand.u32 2147483647, %v37
  %vm54 = vcmp.lt.f32.partialorder %v53, 0.0004427343
  %v55 = vsel %vm54, %v52, %v49
  %v56 = vadd.f32 %v28, %v46
  %v57 = vadd.f32 %v29, %v55
  %59 = vset.pattern.permute.xlu0 0
  %60 = vperm.xlu0 %59, %v23
  %v61 = vpop.permute.xlu0 %60
  %v63 = vmul.f32 %v56, %v61
  %v64 = vmul.f32 %v57, %v61
  %v65 = vld [vmem:[#allocation2] sm:$0xff]
  %v66 = vadd.f32 %v65, %v63
  %v67 = vadd.f32 %v66, %v64
  %68 = vst [vmem:[#allocation2] sm:$0xff] %v67
  // Predicated region
  $region18: #{channel_masked_bce_with_logits_loss_2d.1} parent=0 // pred_check
    %p69 = pneg %p14
  $region19: #{channel_masked_bce_with_logits_loss_2d.1} parent=0 // pred_check_branch
    %71 = sbr.rel (%p69) target = $region21
  $region20: #{channel_masked_bce_with_logits_loss_2d.1} parent=0 // pred_region
    %v72 = vld [vmem:[#allocation2] sm:$0xff]
    %v73 = vrot.slane %v72, 4
    %v74 = vadd.f32 %v72, %v73
    %v75 = vrot.slane %v74, 2
    %v76 = vadd.f32 %v74, %v75
    %v77 = vrot.slane %v76, 1
    %v78 = vadd.f32 %v76, %v77
    %79 = vst [vmem:[%s3] sm:$0x1] %v78
  $region21: #{channel_masked_bce_with_logits_loss_2d.1} parent=0 // pred_fallthru
    _
  // Predicated region
  $region22: #{channel_masked_bce_with_logits_loss_2d.1} parent=0 // pred_check
    _
  $region23: #{channel_masked_bce_with_logits_loss_2d.1} parent=0 // pred_check_branch
    %81 = sbr.rel (0) target = $region25
  $region24: #{channel_masked_bce_with_logits_loss_2d.1} parent=0 // pred_region
    _
  $region25: #{channel_masked_bce_with_logits_loss_2d.1} parent=0 // pred_fallthru
    _
  // Predicated region
  $region26: #{channel_masked_bce_with_logits_loss_2d.1} parent=0 // pred_check
    _
  $region27: #{channel_masked_bce_with_logits_loss_2d.1} parent=0 // pred_check_branch
    %83 = sbr.rel (0) target = $region29
  $region28: #{channel_masked_bce_with_logits_loss_2d.1} parent=0 // pred_region
    _
  $region29: #{channel_masked_bce_with_logits_loss_2d.1} parent=0 // pred_fallthru
    _

</llo_original>
